<compile_context>
chip_gen: v6e
topology: v6e:2x2x1
jax: 0.10.0
libtpu: 0.0.40
codegen_flags: <defaults>
</compile_context>

<pallas_src>
import jax
import jax.numpy as jnp
from jax import lax
from jax.experimental import pallas as pl
from jax.experimental.pallas import tpu as pltpu


# ----------------------------------------------------------------------------
# helpers
# ----------------------------------------------------------------------------
def _round_up(x, m):
    return ((x + m - 1) // m) * m


def _divisors_desc(n):
    return [d for d in range(n, 0, -1) if n % d == 0]


def _vmem_limit_bytes():
    """Generation-aware VMEM limit: ~48 MiB on 64 MiB parts (v7x),
    ~96 MiB on 128 MiB parts (v5e/v6e)."""
    cap = 64 * 1024 * 1024
    try:
        cap = int(pltpu.get_tpu_info().vmem_capacity_bytes)
    except Exception:
        pass
    return max(32 * 1024 * 1024, min(cap - 16 * 1024 * 1024, 96 * 1024 * 1024))


def _rnn_tiles(S, B, D, H, budget_bytes):
    """Pick (TS, TB). Keep TB as large as possible (the recurrence is serial in
    time, so every extra batch tile re-runs the whole serial loop on a 1-TC
    chip); when VMEM is tight, shrink the TIME tile first."""
    def cost(ts, tb):
        return (2 * 2 * ts * tb * D            # bf16 emb block, double-buffered
                + 2 * 2 * ts * tb * H          # bf16 out block, double-buffered
                + 4 * ts * tb * H              # f32 U@x scratch
                + 4 * tb * H                   # f32 h carry
                + 2 * 2 * (H * D + H * H)      # bf16 weights, double-buffered
                + 4 * H)                       # f32 bias
    tb_cands = [B] + [tb for tb in _divisors_desc(B) if tb != B and tb % 8 == 0]
    ts_cands = _divisors_desc(S)
    for tb in tb_cands:
        for ts in ts_cands:
            if cost(ts, tb) <= budget_bytes:
                return ts, tb
    return 1, tb_cands[-1]


# ----------------------------------------------------------------------------
# Kernel 1: tanh-RNN recurrence, time-major, grid = (batch tiles, time tiles).
#   out[t] = tanh( x_t @ Uw.T + (ub + wb) + h_{t-1} @ Ww.T ),   h_0 = 0
# h persists across time tiles in a VMEM scratch; inside a tile it is a
# fori_loop carry (no per-step VMEM round trip on the serial chain).
# ----------------------------------------------------------------------------
def rnn_kernel(emb_ref, uw_ref, b_ref, ww_ref, out_ref, h_scr, ux_scr):
    TS, TB, D = emb_ref.shape
    H = h_scr.shape[-1]
    t_blk = pl.program_id(1)

    @pl.when(t_blk == 0)
    def _():
        h_scr[...] = jnp.zeros_like(h_scr)

    # Precompute U @ x_t for the whole time tile with one bf16 MXU matmul and
    # fold in both Linear biases once; keep it in f32 scratch for the recurrence.
    x2 = emb_ref[...].reshape(TS * TB, D)                      # bf16
    ux = lax.dot_general(
        x2, uw_ref[...],
        dimension_numbers=(((1,), (1,)), ((), ())),            # x @ Uw.T (PyTorch layout)
        preferred_element_type=jnp.float32,
    ) + b_ref[...]
    ux_scr[...] = ux.reshape(TS, TB, H)

    # TODO(synk): hold Ww in MXU weight registers across the serial loop via
    # pltpu.matmul_push_rhs / matmul_acc_lhs / matmul_pop (RHS is identical
    # every step); kept as a plain dot_general here for robustness.
    def body(t, h):                                            # h: (TB, H) f32 carry
        wh = lax.dot_general(
            h.astype(jnp.bfloat16), ww_ref[...],
            dimension_numbers=(((1,), (1,)), ((), ())),        # h @ Ww.T
            preferred_element_type=jnp.float32,
        )
        h_new = jnp.tanh(ux_scr[t] + wh)                       # f32 add + tanh
        out_ref[t] = h_new.astype(out_ref.dtype)               # bf16 lane-dense store
        return h_new

    h_final = lax.fori_loop(0, TS, body, h_scr[...],
                            unroll=(TS if TS <= 16 else 4))
    h_scr[...] = h_final                                       # once per time tile


# ----------------------------------------------------------------------------
# Kernel 2: tiled projection  cls = rnn_out @ emb_w.T
#   grid = (Mp/tm, Vp/tn, Hp/tk); bf16 inputs, f32 output accumulated in place
#   (output block is resident across the k axis; no acc scratch needed).
# ----------------------------------------------------------------------------
def proj_kernel(x_ref, w_ref, o_ref):
    @pl.when(pl.program_id(2) == 0)
    def _():
        o_ref[...] = jnp.zeros_like(o_ref)

    o_ref[...] += lax.dot_general(
        x_ref[...], w_ref[...],
        dimension_numbers=(((1,), (1,)), ((), ())),            # x @ emb_w.T
        preferred_element_type=jnp.float32,
    )


# ----------------------------------------------------------------------------
# Wrapper: embedding gather + layout glue in plain JAX, hot paths in Pallas.
# ----------------------------------------------------------------------------
def model_forward(ids, emb_w, u_weight, u_bias, w_weight, w_bias):
    B, S = ids.shape
    V, D = emb_w.shape
    H = w_weight.shape[0]
    assert H == D, "weight tying (rnn_out @ emb.T) requires hidden_size == input_emb_dim"

    vmem_limit = _vmem_limit_bytes()

    # TODO(synk): fuse the gather into the RNN kernel via PrefetchScalarGridSpec(ids)
    # + per-row DMA if the materialized [S,B,D] intermediate shows up in profiles.
    emb_tm = jnp.take(emb_w.astype(jnp.bfloat16), ids.T, axis=0)      # [S, B, D] bf16

    bias = (u_bias + w_bias).reshape(1, H).astype(jnp.float32)        # folded, f32
    uw_bf = u_weight.astype(jnp.bfloat16)                             # PyTorch layout (H, D)
    ww_bf = w_weight.astype(jnp.bfloat16)                             # (H, H)

    # VMEM-aware tiles: maximize TB, tile over time when VMEM is tight.
    TS, TB = _rnn_tiles(S, B, D, H, vmem_limit // 2)
    # TODO(synk): on v7x (2 TensorCores) cap TB at B/2 when B >= 16 so the
    # "parallel" batch axis actually shards across both cores.

    rnn_out_tm = pl.pallas_call(
        rnn_kernel,
        out_shape=jax.ShapeDtypeStruct((S, B, H), jnp.bfloat16),
        grid=(B // TB, S // TS),
        in_specs=[
            pl.BlockSpec((TS, TB, D), lambda b, t: (t, b, 0)),
            pl.BlockSpec((H, D), lambda b, t: (0, 0)),
            pl.BlockSpec((1, H), lambda b, t: (0, 0)),
            pl.BlockSpec((H, H), lambda b, t: (0, 0)),
        ],
        out_specs=pl.BlockSpec((TS, TB, H), lambda b, t: (t, b, 0)),
        scratch_shapes=[
            pltpu.VMEM((TB, H), jnp.float32),       # h carry across time tiles
            pltpu.VMEM((TS, TB, H), jnp.float32),   # f32 U@x + bias for this tile
        ],
        compiler_params=pltpu.CompilerParams(
            dimension_semantics=("parallel", "arbitrary"),
            vmem_limit_bytes=vmem_limit,
        ),
    )(emb_tm, uw_bf, bias, ww_bf)

    # [S, B, H] -> [B*S, H] bf16 glue on the small hidden-dim tensor.
    x = jnp.transpose(rnn_out_tm, (1, 0, 2)).reshape(B * S, H)

    # Tiled bf16 MXU projection against the untransposed embedding matrix [V, H].
    M = B * S
    tm = min(256, _round_up(M, 16))        # bf16 needs tm multiple of 16
    tn = min(512, _round_up(V, 128))       # lane-dense, MXU-aligned
    tk = min(512, _round_up(H, 128))
    Mp, Vp, Hp = _round_up(M, tm), _round_up(V, tn), _round_up(H, tk)

    x_p = jnp.pad(x, ((0, Mp - M), (0, Hp - H)))
    w_p = jnp.pad(emb_w.astype(jnp.bfloat16), ((0, Vp - V), (0, Hp - H)))

    cls = pl.pallas_call(
        proj_kernel,
        out_shape=jax.ShapeDtypeStruct((Mp, Vp), jnp.float32),
        grid=(Mp // tm, Vp // tn, Hp // tk),
        in_specs=[
            pl.BlockSpec((tm, tk), lambda i, j, k: (i, k)),
            pl.BlockSpec((tn, tk), lambda i, j, k: (j, k)),
        ],
        out_specs=pl.BlockSpec((tm, tn), lambda i, j, k: (i, j)),
        compiler_params=pltpu.CompilerParams(
            dimension_semantics=("parallel", "parallel", "arbitrary"),
            vmem_limit_bytes=vmem_limit,
        ),
    )(x_p, w_p)

    return cls[:M, :V].reshape(B, S, V)


if __name__ == "__main__":
    # Small shapes consistent with the module's forward.
    B, S = 2, 8
    D = H = 32          # input_emb_dim == hidden_size (required by weight tying)
    V = 64              # vocab_size

    key = jax.random.PRNGKey(0)
    k_emb, k_uw, k_ub, k_ww, k_wb, k_ids = jax.random.split(key, 6)

    emb_w = 0.1 * jax.random.normal(k_emb, (V, D), dtype=jnp.float32)
    u_weight = 0.1 * jax.random.normal(k_uw, (H, D), dtype=jnp.float32)   # Linear(D -> H).weight
    u_bias = 0.1 * jax.random.normal(k_ub, (H,), dtype=jnp.float32)
    w_weight = 0.1 * jax.random.normal(k_ww, (H, H), dtype=jnp.float32)   # Linear(H -> H).weight
    w_bias = 0.1 * jax.random.normal(k_wb, (H,), dtype=jnp.float32)

    ids = jax.random.randint(k_ids, (B, S), 0, V, dtype=jnp.int32)

    cls = model_forward(ids, emb_w, u_weight, u_bias, w_weight, w_bias)
    cls = jax.block_until_ready(cls)

    # Pure-JAX f32 reference of the recurrence + projection.
    emb = jnp.take(emb_w, ids, axis=0)
    h = jnp.zeros((B, H), jnp.float32)
    outs = []
    for t in range(S):
        h = jnp.tanh(emb[:, t, :] @ u_weight.T + u_bias + h @ w_weight.T + w_bias)
        outs.append(h)
    ref = jnp.stack(outs, axis=1) @ emb_w.T

    assert cls.shape == (B, S, V)
    # Recurrence + projection run with bf16 MXU operands (f32 accumulation) -> loose tol.
    max_err = float(jnp.max(jnp.abs(cls - ref)))
    assert max_err < 2e-2, max_err

    print("KERNEL_OK")
</pallas_src>

<mosaic_0001>
module attributes {stable_mosaic.version = 11 : i64} {
  func.func @rnn_kernel(%arg0: i32, %arg1: i32, %arg2: memref<8x2x32xbf16, #tpu.memory_space<vmem>>, %arg3: memref<32x32xbf16, #tpu.memory_space<vmem>>, %arg4: memref<1x32xf32, #tpu.memory_space<vmem>>, %arg5: memref<32x32xbf16, #tpu.memory_space<vmem>>, %arg6: memref<8x2x32xbf16, #tpu.memory_space<vmem>>, %arg7: memref<2x32xf32, #tpu.memory_space<vmem>>, %arg8: memref<8x2x32xf32, #tpu.memory_space<vmem>>) attributes {dimension_semantics = [#tpu.dimension_semantics<parallel>, #tpu.dimension_semantics<arbitrary>], iteration_bounds = array<i64: 1, 1>, scalar_prefetch = 0 : i64, scratch_operands = 2 : i64, tpu.core_type = #tpu.core_type<tc>, window_params = [{transform_indices = @transform_0, window_bounds = array<i64: 8, 2, 32>}, {pipeline_mode = #tpu.pipeline_mode<synchronous>, transform_indices = @transform_1, window_bounds = array<i64: 32, 32>}, {pipeline_mode = #tpu.pipeline_mode<synchronous>, transform_indices = @transform_2, window_bounds = array<i64: 1, 32>}, {pipeline_mode = #tpu.pipeline_mode<synchronous>, transform_indices = @transform_3, window_bounds = array<i64: 32, 32>}, {transform_indices = @transform_4, window_bounds = array<i64: 8, 2, 32>}]} {
    %c0_i32 = arith.constant 0 : i32
    %0 = arith.cmpi eq, %arg1, %c0_i32 : i32
    %1 = arith.extui %0 : i1 to i32
    %c0_i32_0 = arith.constant 0 : i32
    %2 = arith.cmpi ne, %1, %c0_i32_0 : i32
    scf.if %2 {
      %cst_71 = arith.constant 0.000000e+00 : f32
      %118 = vector.broadcast %cst_71 : f32 to vector<2x32xf32>
      %c0_72 = arith.constant 0 : index
      %c0_73 = arith.constant 0 : index
      %119 = vector.load %arg7[%c0_72, %c0_73] : memref<2x32xf32, #tpu.memory_space<vmem>>, vector<2x32xf32>
      tpu.vector_store %arg7[%c0_72, %c0_73], %118 {strides = array<i32>} : memref<2x32xf32, #tpu.memory_space<vmem>>, vector<2x32xf32>,
    } else {
    }
    %c0 = arith.constant 0 : index
    %c0_1 = arith.constant 0 : index
    %c0_2 = arith.constant 0 : index
    %3 = vector.load %arg2[%c0, %c0_1, %c0_2] : memref<8x2x32xbf16, #tpu.memory_space<vmem>>, vector<8x2x32xbf16>
    %4 = vector.shape_cast %3 : vector<8x2x32xbf16> to vector<16x32xbf16>
    %c0_3 = arith.constant 0 : index
    %c0_4 = arith.constant 0 : index
    %5 = vector.load %arg3[%c0_3, %c0_4] : memref<32x32xbf16, #tpu.memory_space<vmem>>, vector<32x32xbf16>
    %cst = arith.constant dense<0.000000e+00> : vector<16x32xf32>
    %6 = tpu.matmul %4, %5, %cst {dimension_numbers = #tpu.dot_dimension_numbers<[1], [1], [0], [0], [0, 0, 1, 0], [], []>} : vector<16x32xbf16>, vector<32x32xbf16>, vector<16x32xf32> -> vector<16x32xf32>
    %c0_5 = arith.constant 0 : index
    %c0_6 = arith.constant 0 : index
    %7 = vector.load %arg4[%c0_5, %c0_6] : memref<1x32xf32, #tpu.memory_space<vmem>>, vector<1x32xf32>
    %8 = vector.broadcast %7 : vector<1x32xf32> to vector<16x32xf32>
    %9 = arith.addf %6, %8 : vector<16x32xf32>
    %10 = vector.shape_cast %9 : vector<16x32xf32> to vector<8x2x32xf32>
    %c0_7 = arith.constant 0 : index
    %c0_8 = arith.constant 0 : index
    %c0_9 = arith.constant 0 : index
    %11 = vector.load %arg8[%c0_7, %c0_8, %c0_9] : memref<8x2x32xf32, #tpu.memory_space<vmem>>, vector<8x2x32xf32>
    tpu.vector_store %arg8[%c0_7, %c0_8, %c0_9], %10 {strides = array<i32>} : memref<8x2x32xf32, #tpu.memory_space<vmem>>, vector<8x2x32xf32>,
    %c0_10 = arith.constant 0 : index
    %c0_11 = arith.constant 0 : index
    %12 = vector.load %arg7[%c0_10, %c0_11] : memref<2x32xf32, #tpu.memory_space<vmem>>, vector<2x32xf32>
    %c0_i32_12 = arith.constant 0 : i32
    %13 = arith.truncf %12 : vector<2x32xf32> to vector<2x32xbf16>
    %c0_13 = arith.constant 0 : index
    %c0_14 = arith.constant 0 : index
    %14 = vector.load %arg5[%c0_13, %c0_14] : memref<32x32xbf16, #tpu.memory_space<vmem>>, vector<32x32xbf16>
    %cst_15 = arith.constant dense<0.000000e+00> : vector<2x32xf32>
    %15 = tpu.matmul %13, %14, %cst_15 {dimension_numbers = #tpu.dot_dimension_numbers<[1], [1], [0], [0], [0, 0, 1, 0], [], []>} : vector<2x32xbf16>, vector<32x32xbf16>, vector<2x32xf32> -> vector<2x32xf32>
    %16 = arith.index_cast %c0_i32_12 : i32 to index
    %c0_16 = arith.constant 0 : index
    %c0_17 = arith.constant 0 : index
    %17 = vector.load %arg8[%16, %c0_16, %c0_17] : memref<8x2x32xf32, #tpu.memory_space<vmem>>, vector<1x2x32xf32>
    %18 = vector.shape_cast %17 : vector<1x2x32xf32> to vector<2x32xf32>
    %19 = arith.addf %18, %15 : vector<2x32xf32>
    %20 = math.tanh %19 : vector<2x32xf32>
    %21 = arith.truncf %20 : vector<2x32xf32> to vector<2x32xbf16>
    %22 = arith.index_cast %c0_i32_12 : i32 to index
    %c0_18 = arith.constant 0 : index
    %c0_19 = arith.constant 0 : index
    %23 = vector.load %arg6[%22, %c0_18, %c0_19] : memref<8x2x32xbf16, #tpu.memory_space<vmem>>, vector<1x2x32xbf16>
    %24 = vector.shape_cast %23 : vector<1x2x32xbf16> to vector<2x32xbf16>
    %25 = vector.shape_cast %21 : vector<2x32xbf16> to vector<1x2x32xbf16>
    tpu.vector_store %arg6[%22, %c0_18, %c0_19], %25 {strides = array<i32>} : memref<8x2x32xbf16, #tpu.memory_space<vmem>>, vector<1x2x32xbf16>,
    %c1_i32 = arith.constant 1 : i32
    %26 = arith.truncf %20 : vector<2x32xf32> to vector<2x32xbf16>
    %c0_20 = arith.constant 0 : index
    %c0_21 = arith.constant 0 : index
    %27 = vector.load %arg5[%c0_20, %c0_21] : memref<32x32xbf16, #tpu.memory_space<vmem>>, vector<32x32xbf16>
    %cst_22 = arith.constant dense<0.000000e+00> : vector<2x32xf32>
    %28 = tpu.matmul %26, %27, %cst_22 {dimension_numbers = #tpu.dot_dimension_numbers<[1], [1], [0], [0], [0, 0, 1, 0], [], []>} : vector<2x32xbf16>, vector<32x32xbf16>, vector<2x32xf32> -> vector<2x32xf32>
    %29 = arith.index_cast %c1_i32 : i32 to index
    %c0_23 = arith.constant 0 : index
    %c0_24 = arith.constant 0 : index
    %30 = vector.load %arg8[%29, %c0_23, %c0_24] : memref<8x2x32xf32, #tpu.memory_space<vmem>>, vector<1x2x32xf32>
    %31 = vector.shape_cast %30 : vector<1x2x32xf32> to vector<2x32xf32>
    %32 = arith.addf %31, %28 : vector<2x32xf32>
    %33 = math.tanh %32 : vector<2x32xf32>
    %34 = arith.truncf %33 : vector<2x32xf32> to vector<2x32xbf16>
    %35 = arith.index_cast %c1_i32 : i32 to index
    %c0_25 = arith.constant 0 : index
    %c0_26 = arith.constant 0 : index
    %36 = vector.load %arg6[%35, %c0_25, %c0_26] : memref<8x2x32xbf16, #tpu.memory_space<vmem>>, vector<1x2x32xbf16>
    %37 = vector.shape_cast %36 : vector<1x2x32xbf16> to vector<2x32xbf16>
    %38 = vector.shape_cast %34 : vector<2x32xbf16> to vector<1x2x32xbf16>
    tpu.vector_store %arg6[%35, %c0_25, %c0_26], %38 {strides = array<i32>} : memref<8x2x32xbf16, #tpu.memory_space<vmem>>, vector<1x2x32xbf16>,
    %c2_i32 = arith.constant 2 : i32
    %39 = arith.truncf %33 : vector<2x32xf32> to vector<2x32xbf16>
    %c0_27 = arith.constant 0 : index
    %c0_28 = arith.constant 0 : index
    %40 = vector.load %arg5[%c0_27, %c0_28] : memref<32x32xbf16, #tpu.memory_space<vmem>>, vector<32x32xbf16>
    %cst_29 = arith.constant dense<0.000000e+00> : vector<2x32xf32>
    %41 = tpu.matmul %39, %40, %cst_29 {dimension_numbers = #tpu.dot_dimension_numbers<[1], [1], [0], [0], [0, 0, 1, 0], [], []>} : vector<2x32xbf16>, vector<32x32xbf16>, vector<2x32xf32> -> vector<2x32xf32>
    %42 = arith.index_cast %c2_i32 : i32 to index
    %c0_30 = arith.constant 0 : index
    %c0_31 = arith.constant 0 : index
    %43 = vector.load %arg8[%42, %c0_30, %c0_31] : memref<8x2x32xf32, #tpu.memory_space<vmem>>, vector<1x2x32xf32>
    %44 = vector.shape_cast %43 : vector<1x2x32xf32> to vector<2x32xf32>
    %45 = arith.addf %44, %41 : vector<2x32xf32>
    %46 = math.tanh %45 : vector<2x32xf32>
    %47 = arith.truncf %46 : vector<2x32xf32> to vector<2x32xbf16>
    %48 = arith.index_cast %c2_i32 : i32 to index
    %c0_32 = arith.constant 0 : index
    %c0_33 = arith.constant 0 : index
    %49 = vector.load %arg6[%48, %c0_32, %c0_33] : memref<8x2x32xbf16, #tpu.memory_space<vmem>>, vector<1x2x32xbf16>
    %50 = vector.shape_cast %49 : vector<1x2x32xbf16> to vector<2x32xbf16>
    %51 = vector.shape_cast %47 : vector<2x32xbf16> to vector<1x2x32xbf16>
    tpu.vector_store %arg6[%48, %c0_32, %c0_33], %51 {strides = array<i32>} : memref<8x2x32xbf16, #tpu.memory_space<vmem>>, vector<1x2x32xbf16>,
    %c3_i32 = arith.constant 3 : i32
    %52 = arith.truncf %46 : vector<2x32xf32> to vector<2x32xbf16>
    %c0_34 = arith.constant 0 : index
    %c0_35 = arith.constant 0 : index
    %53 = vector.load %arg5[%c0_34, %c0_35] : memref<32x32xbf16, #tpu.memory_space<vmem>>, vector<32x32xbf16>
    %cst_36 = arith.constant dense<0.000000e+00> : vector<2x32xf32>
    %54 = tpu.matmul %52, %53, %cst_36 {dimension_numbers = #tpu.dot_dimension_numbers<[1], [1], [0], [0], [0, 0, 1, 0], [], []>} : vector<2x32xbf16>, vector<32x32xbf16>, vector<2x32xf32> -> vector<2x32xf32>
    %55 = arith.index_cast %c3_i32 : i32 to index
    %c0_37 = arith.constant 0 : index
    %c0_38 = arith.constant 0 : index
    %56 = vector.load %arg8[%55, %c0_37, %c0_38] : memref<8x2x32xf32, #tpu.memory_space<vmem>>, vector<1x2x32xf32>
    %57 = vector.shape_cast %56 : vector<1x2x32xf32> to vector<2x32xf32>
    %58 = arith.addf %57, %54 : vector<2x32xf32>
    %59 = math.tanh %58 : vector<2x32xf32>
    %60 = arith.truncf %59 : vector<2x32xf32> to vector<2x32xbf16>
    %61 = arith.index_cast %c3_i32 : i32 to index
    %c0_39 = arith.constant 0 : index
    %c0_40 = arith.constant 0 : index
    %62 = vector.load %arg6[%61, %c0_39, %c0_40] : memref<8x2x32xbf16, #tpu.memory_space<vmem>>, vector<1x2x32xbf16>
    %63 = vector.shape_cast %62 : vector<1x2x32xbf16> to vector<2x32xbf16>
    %64 = vector.shape_cast %60 : vector<2x32xbf16> to vector<1x2x32xbf16>
    tpu.vector_store %arg6[%61, %c0_39, %c0_40], %64 {strides = array<i32>} : memref<8x2x32xbf16, #tpu.memory_space<vmem>>, vector<1x2x32xbf16>,
    %c4_i32 = arith.constant 4 : i32
    %65 = arith.truncf %59 : vector<2x32xf32> to vector<2x32xbf16>
    %c0_41 = arith.constant 0 : index
    %c0_42 = arith.constant 0 : index
    %66 = vector.load %arg5[%c0_41, %c0_42] : memref<32x32xbf16, #tpu.memory_space<vmem>>, vector<32x32xbf16>
    %cst_43 = arith.constant dense<0.000000e+00> : vector<2x32xf32>
    %67 = tpu.matmul %65, %66, %cst_43 {dimension_numbers = #tpu.dot_dimension_numbers<[1], [1], [0], [0], [0, 0, 1, 0], [], []>} : vector<2x32xbf16>, vector<32x32xbf16>, vector<2x32xf32> -> vector<2x32xf32>
    %68 = arith.index_cast %c4_i32 : i32 to index
    %c0_44 = arith.constant 0 : index
    %c0_45 = arith.constant 0 : index
    %69 = vector.load %arg8[%68, %c0_44, %c0_45] : memref<8x2x32xf32, #tpu.memory_space<vmem>>, vector<1x2x32xf32>
    %70 = vector.shape_cast %69 : vector<1x2x32xf32> to vector<2x32xf32>
    %71 = arith.addf %70, %67 : vector<2x32xf32>
    %72 = math.tanh %71 : vector<2x32xf32>
    %73 = arith.truncf %72 : vector<2x32xf32> to vector<2x32xbf16>
    %74 = arith.index_cast %c4_i32 : i32 to index
    %c0_46 = arith.constant 0 : index
    %c0_47 = arith.constant 0 : index
    %75 = vector.load %arg6[%74, %c0_46, %c0_47] : memref<8x2x32xbf16, #tpu.memory_space<vmem>>, vector<1x2x32xbf16>
    %76 = vector.shape_cast %75 : vector<1x2x32xbf16> to vector<2x32xbf16>
    %77 = vector.shape_cast %73 : vector<2x32xbf16> to vector<1x2x32xbf16>
    tpu.vector_store %arg6[%74, %c0_46, %c0_47], %77 {strides = array<i32>} : memref<8x2x32xbf16, #tpu.memory_space<vmem>>, vector<1x2x32xbf16>,
    %c5_i32 = arith.constant 5 : i32
    %78 = arith.truncf %72 : vector<2x32xf32> to vector<2x32xbf16>
    %c0_48 = arith.constant 0 : index
    %c0_49 = arith.constant 0 : index
    %79 = vector.load %arg5[%c0_48, %c0_49] : memref<32x32xbf16, #tpu.memory_space<vmem>>, vector<32x32xbf16>
    %cst_50 = arith.constant dense<0.000000e+00> : vector<2x32xf32>
    %80 = tpu.matmul %78, %79, %cst_50 {dimension_numbers = #tpu.dot_dimension_numbers<[1], [1], [0], [0], [0, 0, 1, 0], [], []>} : vector<2x32xbf16>, vector<32x32xbf16>, vector<2x32xf32> -> vector<2x32xf32>
    %81 = arith.index_cast %c5_i32 : i32 to index
    %c0_51 = arith.constant 0 : index
    %c0_52 = arith.constant 0 : index
    %82 = vector.load %arg8[%81, %c0_51, %c0_52] : memref<8x2x32xf32, #tpu.memory_space<vmem>>, vector<1x2x32xf32>
    %83 = vector.shape_cast %82 : vector<1x2x32xf32> to vector<2x32xf32>
    %84 = arith.addf %83, %80 : vector<2x32xf32>
    %85 = math.tanh %84 : vector<2x32xf32>
    %86 = arith.truncf %85 : vector<2x32xf32> to vector<2x32xbf16>
    %87 = arith.index_cast %c5_i32 : i32 to index
    %c0_53 = arith.constant 0 : index
    %c0_54 = arith.constant 0 : index
    %88 = vector.load %arg6[%87, %c0_53, %c0_54] : memref<8x2x32xbf16, #tpu.memory_space<vmem>>, vector<1x2x32xbf16>
    %89 = vector.shape_cast %88 : vector<1x2x32xbf16> to vector<2x32xbf16>
    %90 = vector.shape_cast %86 : vector<2x32xbf16> to vector<1x2x32xbf16>
    tpu.vector_store %arg6[%87, %c0_53, %c0_54], %90 {strides = array<i32>} : memref<8x2x32xbf16, #tpu.memory_space<vmem>>, vector<1x2x32xbf16>,
    %c6_i32 = arith.constant 6 : i32
    %91 = arith.truncf %85 : vector<2x32xf32> to vector<2x32xbf16>
    %c0_55 = arith.constant 0 : index
    %c0_56 = arith.constant 0 : index
    %92 = vector.load %arg5[%c0_55, %c0_56] : memref<32x32xbf16, #tpu.memory_space<vmem>>, vector<32x32xbf16>
    %cst_57 = arith.constant dense<0.000000e+00> : vector<2x32xf32>
    %93 = tpu.matmul %91, %92, %cst_57 {dimension_numbers = #tpu.dot_dimension_numbers<[1], [1], [0], [0], [0, 0, 1, 0], [], []>} : vector<2x32xbf16>, vector<32x32xbf16>, vector<2x32xf32> -> vector<2x32xf32>
    %94 = arith.index_cast %c6_i32 : i32 to index
    %c0_58 = arith.constant 0 : index
    %c0_59 = arith.constant 0 : index
    %95 = vector.load %arg8[%94, %c0_58, %c0_59] : memref<8x2x32xf32, #tpu.memory_space<vmem>>, vector<1x2x32xf32>
    %96 = vector.shape_cast %95 : vector<1x2x32xf32> to vector<2x32xf32>
    %97 = arith.addf %96, %93 : vector<2x32xf32>
    %98 = math.tanh %97 : vector<2x32xf32>
    %99 = arith.truncf %98 : vector<2x32xf32> to vector<2x32xbf16>
    %100 = arith.index_cast %c6_i32 : i32 to index
    %c0_60 = arith.constant 0 : index
    %c0_61 = arith.constant 0 : index
    %101 = vector.load %arg6[%100, %c0_60, %c0_61] : memref<8x2x32xbf16, #tpu.memory_space<vmem>>, vector<1x2x32xbf16>
    %102 = vector.shape_cast %101 : vector<1x2x32xbf16> to vector<2x32xbf16>
    %103 = vector.shape_cast %99 : vector<2x32xbf16> to vector<1x2x32xbf16>
    tpu.vector_store %arg6[%100, %c0_60, %c0_61], %103 {strides = array<i32>} : memref<8x2x32xbf16, #tpu.memory_space<vmem>>, vector<1x2x32xbf16>,
    %c7_i32 = arith.constant 7 : i32
    %104 = arith.truncf %98 : vector<2x32xf32> to vector<2x32xbf16>
    %c0_62 = arith.constant 0 : index
    %c0_63 = arith.constant 0 : index
    %105 = vector.load %arg5[%c0_62, %c0_63] : memref<32x32xbf16, #tpu.memory_space<vmem>>, vector<32x32xbf16>
    %cst_64 = arith.constant dense<0.000000e+00> : vector<2x32xf32>
    %106 = tpu.matmul %104, %105, %cst_64 {dimension_numbers = #tpu.dot_dimension_numbers<[1], [1], [0], [0], [0, 0, 1, 0], [], []>} : vector<2x32xbf16>, vector<32x32xbf16>, vector<2x32xf32> -> vector<2x32xf32>
    %107 = arith.index_cast %c7_i32 : i32 to index
    %c0_65 = arith.constant 0 : index
    %c0_66 = arith.constant 0 : index
    %108 = vector.load %arg8[%107, %c0_65, %c0_66] : memref<8x2x32xf32, #tpu.memory_space<vmem>>, vector<1x2x32xf32>
    %109 = vector.shape_cast %108 : vector<1x2x32xf32> to vector<2x32xf32>
    %110 = arith.addf %109, %106 : vector<2x32xf32>
    %111 = math.tanh %110 : vector<2x32xf32>
    %112 = arith.truncf %111 : vector<2x32xf32> to vector<2x32xbf16>
    %113 = arith.index_cast %c7_i32 : i32 to index
    %c0_67 = arith.constant 0 : index
    %c0_68 = arith.constant 0 : index
    %114 = vector.load %arg6[%113, %c0_67, %c0_68] : memref<8x2x32xbf16, #tpu.memory_space<vmem>>, vector<1x2x32xbf16>
    %115 = vector.shape_cast %114 : vector<1x2x32xbf16> to vector<2x32xbf16>
    %116 = vector.shape_cast %112 : vector<2x32xbf16> to vector<1x2x32xbf16>
    tpu.vector_store %arg6[%113, %c0_67, %c0_68], %116 {strides = array<i32>} : memref<8x2x32xbf16, #tpu.memory_space<vmem>>, vector<1x2x32xbf16>,
    %c8_i32 = arith.constant 8 : i32
    %c0_69 = arith.constant 0 : index
    %c0_70 = arith.constant 0 : index
    %117 = vector.load %arg7[%c0_69, %c0_70] : memref<2x32xf32, #tpu.memory_space<vmem>>, vector<2x32xf32>
    tpu.vector_store %arg7[%c0_69, %c0_70], %111 {strides = array<i32>} : memref<2x32xf32, #tpu.memory_space<vmem>>, vector<2x32xf32>,
    return
  }
  func.func @transform_0(%arg0: i32, %arg1: i32) -> (i32, i32, i32) {
    %c0_i32 = arith.constant 0 : i32
    %c0_i32_0 = arith.constant 0 : i32
    return %arg1, %arg0, %c0_i32 : i32, i32, i32
  }
  func.func @transform_1(%arg0: i32, %arg1: i32) -> (i32, i32) {
    %c0_i32 = arith.constant 0 : i32
    %c0_i32_0 = arith.constant 0 : i32
    %c0_i32_1 = arith.constant 0 : i32
    return %c0_i32, %c0_i32_0 : i32, i32
  }
  func.func @transform_2(%arg0: i32, %arg1: i32) -> (i32, i32) {
    %c0_i32 = arith.constant 0 : i32
    %c0_i32_0 = arith.constant 0 : i32
    %c0_i32_1 = arith.constant 0 : i32
    return %c0_i32, %c0_i32_0 : i32, i32
  }
  func.func @transform_3(%arg0: i32, %arg1: i32) -> (i32, i32) {
    %c0_i32 = arith.constant 0 : i32
    %c0_i32_0 = arith.constant 0 : i32
    %c0_i32_1 = arith.constant 0 : i32
    return %c0_i32, %c0_i32_0 : i32, i32
  }
  func.func @transform_4(%arg0: i32, %arg1: i32) -> (i32, i32, i32) {
    %c0_i32 = arith.constant 0 : i32
    %c0_i32_0 = arith.constant 0 : i32
    return %arg1, %arg0, %c0_i32 : i32, i32, i32
  }
}

</mosaic_0001>

<llo_original>
// kernel: tpu_custom_call.1
$region0: #{tpu_custom_call.1}
  #allocation0 [shape = 'u32[]', space=smem, size = 0x4, offset = 0x4, fixed_abs, tag = 'smem constant byte address 0x4 - core index']
  #allocation1 [shape = 'u32[144,128]{1,0:T(1,128)}', space=vmem, size = 0x12000, scoped, tag = 'internal scratch']
  #allocation2 [shape = 'f32[2,32]{1,0:T(2,128)}', space=vmem, size = 0x400, scoped, tag = 'scratch operand']
  #allocation3 [shape = 'f32[8,2,32]{2,1,0:T(2,128)}', space=vmem, size = 0x2000, scoped, tag = 'scratch operand']
  %s0 = inlined_call_operand.hbm [shape: bf16[8,2,32], index: 0, kind: input, shape index: {}]
  %s1 = inlined_call_operand.hbm [shape: bf16[32,32], index: 1, kind: input, shape index: {}]
  %s2 = inlined_call_operand.vmem [shape: f32[1,32], index: 2, kind: input, shape index: {}]
  %s3 = inlined_call_operand.hbm [shape: bf16[32,32], index: 3, kind: input, shape index: {}]
  %s4 = inlined_call_operand.hbm [shape: bf16[8,2,32], index: 4, kind: output, shape index: {}]
  %s5 = sld [smem:[#allocation0]]
  $region42: #{tpu_custom_call.1} parent=0
    _
  %s7 = ssub.s32 1, %s5
  %s8 = scalar_select 0, %s7, %s5
  $region1: #{tpu_custom_call.1} parent=0
    #allocation4 [shape = 'u8[4096]{0}', space=vmem, size = 0x1000, scoped, tag = 'input window, operand 0, single buffered']
    #allocation5 [shape = 's32[1]{0}', space=sflag, size = 0x4, scoped, tag = 'scoped memory for tpu_custom_call.1']
    #allocation6 [shape = 's32[1]{0}', space=sflag, size = 0x4, scoped, tag = 'scoped memory for tpu_custom_call.1']
    #allocation7 [shape = 'u8[8192]{0}', space=vmem, size = 0x2000, scoped, tag = 'input window, operand 1, single buffered']
    #allocation8 [shape = 's32[1]{0}', space=sflag, size = 0x4, scoped, tag = 'scoped memory for tpu_custom_call.1']
    #allocation9 [shape = 'u8[8192]{0}', space=vmem, size = 0x2000, scoped, tag = 'input window, operand 3, single buffered']
    #allocation10 [shape = 'u8[4096]{0}', space=vmem, size = 0x1000, scoped, tag = 'output window, operand 0, single buffered']
    %9 = vsyncpa [#allocation5], 0
    %10 = vsyncpa [#allocation8], 0
    %11 = vsyncpa [#allocation6], 0
    // Predicated region
    $region2: #{tpu_custom_call.1} parent=1 // pred_check
      _
    $region3: #{tpu_custom_call.1} parent=1 // pred_check_branch
      %13 = sbr.rel (0) target = $region5
    $region4: #{tpu_custom_call.1} parent=1 // pred_region
      %s15 = ssub.s32 128, 128
      %16 = vsyncadd [#allocation5], %s15
      %s17 = sshll.u32 [#allocation4], 4
      %s18 = int_to_ptr.vmem [resolvable:$true] %s17
      %23 = dma.hbm_to_vmem [thread:$0]  %s0, 128, %s18, [#allocation5], 16, 16, 1
    $region5: #{tpu_custom_call.1} parent=1 // pred_fallthru
      _
    // Predicated region
    $region6: #{tpu_custom_call.1} parent=1 // pred_check
      _
    $region7: #{tpu_custom_call.1} parent=1 // pred_check_branch
      %25 = sbr.rel (0) target = $region9
    $region8: #{tpu_custom_call.1} parent=1 // pred_region
      %s27 = ssub.s32 256, 256
      %28 = vsyncadd [#allocation8], %s27
      %s29 = sshll.u32 [#allocation7], 4
      %s30 = int_to_ptr.vmem [resolvable:$true] %s29
      %35 = dma.hbm_to_vmem [thread:$0]  %s1, 256, %s30, [#allocation8], 64, 64, 4
    $region9: #{tpu_custom_call.1} parent=1 // pred_fallthru
      _
    // Predicated region
    $region10: #{tpu_custom_call.1} parent=1 // pred_check
      _
    $region11: #{tpu_custom_call.1} parent=1 // pred_check_branch
      %37 = sbr.rel (0) target = $region13
    $region12: #{tpu_custom_call.1} parent=1 // pred_region
      _
    $region13: #{tpu_custom_call.1} parent=1 // pred_fallthru
      _
    // Predicated region
    $region14: #{tpu_custom_call.1} parent=1 // pred_check
      _
    $region15: #{tpu_custom_call.1} parent=1 // pred_check_branch
      %39 = sbr.rel (0) target = $region17
    $region16: #{tpu_custom_call.1} parent=1 // pred_region
      %s41 = ssub.s32 256, 256
      %42 = vsyncadd [#allocation8], %s41
      %s43 = sshll.u32 [#allocation9], 4
      %s44 = int_to_ptr.vmem [resolvable:$true] %s43
      %49 = dma.hbm_to_vmem [thread:$0]  %s3, 256, %s44, [#allocation8], 64, 64, 4
    $region17: #{tpu_custom_call.1} parent=1 // pred_fallthru
      _
    // Predicated region
    $region18: #{tpu_custom_call.1} parent=1 // pred_check
      _
    $region19: #{tpu_custom_call.1} parent=1 // pred_check_branch
      %51 = sbr.rel (0) target = $region21
    $region20: #{tpu_custom_call.1} parent=1 // pred_region
      %52 = dma.done [#allocation5], 128
    $region21: #{tpu_custom_call.1} parent=1 // pred_fallthru
      _
    // Predicated region
    $region22: #{tpu_custom_call.1} parent=1 // pred_check
      _
    $region23: #{tpu_custom_call.1} parent=1 // pred_check_branch
      %54 = sbr.rel (0) target = $region25
    $region24: #{tpu_custom_call.1} parent=1 // pred_region
      %55 = dma.done [#allocation8], 256
    $region25: #{tpu_custom_call.1} parent=1 // pred_fallthru
      _
    // Predicated region
    $region26: #{tpu_custom_call.1} parent=1 // pred_check
      _
    $region27: #{tpu_custom_call.1} parent=1 // pred_check_branch
      %57 = sbr.rel (0) target = $region29
    $region28: #{tpu_custom_call.1} parent=1 // pred_region
      %58 = dma.done [#allocation8], 256
    $region29: #{tpu_custom_call.1} parent=1 // pred_fallthru
      _
    %p60 = scmp.eq.s32.totalorder 0, 0
    // Predicated region
    $region30: #{tpu_custom_call.1} parent=1 // pred_check
      %p61 = pneg %p60
    $region31: #{tpu_custom_call.1} parent=1 // pred_check_branch
      %63 = sbr.rel (%p61) target = $region33
    $region32: #{tpu_custom_call.1} parent=1 // pred_region
      %vm64 = vcmask 254976
      %65 = vst.msk [vmem:[#allocation2] sm:$0x3] %vm64, 0.0
    $region33: #{tpu_custom_call.1} parent=1 // pred_fallthru
      _
    %v66 = vld [vmem:[#allocation4] sm:$0x1]
    %v67 = vld [vmem:[#allocation4 + $0x1] sm:$0x1]
    %v68 = vld [vmem:[#allocation4 + $0x2] sm:$0x1]
    %v69 = vld [vmem:[#allocation4 + $0x3] sm:$0x1]
    %v70 = vld [vmem:[#allocation4 + $0x4] sm:$0x1]
    %v71 = vld [vmem:[#allocation4 + $0x5] sm:$0x1]
    %v72 = vld [vmem:[#allocation4 + $0x6] sm:$0x1]
    %v73 = vld [vmem:[#allocation4 + $0x7] sm:$0x1]
    %v74 = vld [vmem:[#allocation7] sm:$0xf]
    %v75 = vld [vmem:[#allocation7 + $0x4] sm:$0xf]
    %v76 = vld [vmem:[#allocation7 + $0x8] sm:$0xf]
    %v77 = vld [vmem:[#allocation7 + $0xc] sm:$0xf]
    %v78 = vld [vmem:[%s2] sm:$0x1]
    %v80 = vlaneseq
    %v81 = vshrl.u32 %v80, 7
    %v82 = vsub.s32 0, %v81
    %v83 = vrot.slane %v78, %v82
    %v93 = vcombine.low %v66, %v67
    %v94 = vcombine.low %v68, %v69
    %v95 = vcombine.low %v70, %v71
    %v96 = vcombine.low %v72, %v73
    %v98 = vunpack.c.l.s4 1966171168
    %v99 = vunpack.c.0.s8 %v98
    %v100 = vlaneseq
    %v101 = vshrl.u32 %v100, 7
    %v102 = vsub.s32 %v99, %v101
    %v103 = vrot.slane %v93, %v102
    %v105 = vunpack.c.l.s4 1966171168
    %v106 = vunpack.c.0.s8 %v105
    %v107 = vlaneseq
    %v108 = vshrl.u32 %v107, 7
    %v109 = vsub.s32 %v106, %v108
    %v110 = vrot.slane %v94, %v109
    %v112 = vunpack.c.l.s4 1966171168
    %v113 = vunpack.c.0.s8 %v112
    %v114 = vlaneseq
    %v115 = vshrl.u32 %v114, 7
    %v116 = vsub.s32 %v113, %v115
    %v117 = vrot.slane %v95, %v116
    %v119 = vunpack.c.l.s4 1966171168
    %v120 = vunpack.c.0.s8 %v119
    %v121 = vlaneseq
    %v122 = vshrl.u32 %v121, 7
    %v123 = vsub.s32 %v120, %v122
    %v124 = vrot.slane %v96, %v123
    %v125 = vcombine.low %v103, %v110
    %v126 = vcombine.low %v117, %v124
    %v128 = vunpack.c.l.s4 1966171168
    %v129 = vunpack.c.0.s8 %v128
    %v130 = vlaneseq
    %v131 = vshrl.u32 %v130, 7
    %v132 = vsub.s32 %v129, %v131
    %v133 = vrot.slane %v125, %v132
    %v135 = vunpack.c.l.s4 1966171168
    %v136 = vunpack.c.0.s8 %v135
    %v137 = vlaneseq
    %v138 = vshrl.u32 %v137, 7
    %v139 = vsub.s32 %v136, %v138
    %v140 = vrot.slane %v126, %v139
    %v141 = vcombine.low %v133, %v140
    %v146 = vunpack.c.l.b16 %v74
    %v147 = vunpack.c.l.b16 %v75
    %v148 = vunpack.c.l.b16 %v76
    %v149 = vunpack.c.l.b16 %v77
    %v150 = vpack.c.b16 %v147, %v146
    %v151 = vpack.c.b16 %v149, %v148
    %vm152 = vcmask 261120
    %v154 = vsel %vm152, %v141, 0
    %v157 = vsel %vm152, %v150, 0
    %v160 = vsel %vm152, %v151, 0
    %162 = vmatprep.subr.bf16.mxu0 0
    %163 = vmatpush1.bf16.xpose.msra.mxu0 0
    %164 = vmatprep.subr.bf16.mxu0 0
    %165 = vmatpush1.bf16.xpose.msra.mxu0 0
    %166 = vmatprep.subr.bf16.mxu0 0
    %167 = vmatpush1.bf16.xpose.msra.mxu0 0
    %168 = vmatprep.subr.bf16.mxu0 0
    %169 = vmatpush1.bf16.xpose.msra.mxu0 0
    %170 = vmatprep.subr.bf16.mxu0 0
    %171 = vmatpush1.bf16.xpose.msra.mxu0 0
    %172 = vmatprep.subr.bf16.mxu0 0
    %173 = vmatpush1.bf16.xpose.msra.mxu0 0
    %174 = vmatprep.subr.bf16.mxu0 0
    %175 = vmatpush1.bf16.xpose.msra.mxu0 %v160
    %176 = vmatprep.subr.bf16.mxu0 0
    %177 = vmatpush1.bf16.xpose.msra.mxu0 %v157
    %178 = vmatprep.subr.bf16.mxu0 0
    %179 = vmatpush2.bf16.xpose.msra.mxu0 0
    %180 = vmatprep.subr.bf16.mxu0 0
    %181 = vmatpush2.bf16.xpose.msra.mxu0 0
    %182 = vmatprep.subr.bf16.mxu0 0
    %183 = vmatpush2.bf16.xpose.msra.mxu0 0
    %184 = vmatprep.subr.bf16.mxu0 0
    %185 = vmatpush2.bf16.xpose.msra.mxu0 0
    %186 = vmatprep.subr.bf16.mxu0 0
    %187 = vmatpush2.bf16.xpose.msra.mxu0 0
    %188 = vmatprep.subr.bf16.mxu0 0
    %189 = vmatpush2.bf16.xpose.msra.mxu0 0
    %190 = vmatprep.subr.bf16.mxu0 0
    %191 = vmatpush2.bf16.xpose.msra.mxu0 0
    %192 = vmatprep.subr.bf16.mxu0 0
    %193 = vmatpush2.bf16.xpose.msra.mxu0 0
    %194 = vmatprep.mubr.bf16.mxu0 0
    %195 = vmatmul.mubr.bf16.gmra.mxu0 %v154
    %v196 = vpop.f32.mrf.mxu0
    %v197 = vadd.f32 %v83, %v196
    %v198 = vpop.f32.mrf.mxu0
    %v199 = vpop.f32.mrf.mxu0
    %v200 = vadd.f32 %v83, %v199
    %v201 = vpop.f32.mrf.mxu0
    %202 = vdwg.mxu0
    %v205 = vcombine.high %v197, %v197
    %v207 = vunpack.c.l.s4 1983009808
    %v208 = vunpack.c.0.s8 %v207
    %v209 = vlaneseq
    %v210 = vshrl.u32 %v209, 7
    %v211 = vsub.s32 %v208, %v210
    %v212 = vrot.slane %v197, %v211
    %v214 = vunpack.c.l.s4 1983009808
    %v215 = vunpack.c.0.s8 %v214
    %v216 = vlaneseq
    %v217 = vshrl.u32 %v216, 7
    %v218 = vsub.s32 %v215, %v217
    %v219 = vrot.slane %v205, %v218
    %v220 = vcombine.high %v212, %v212
    %v221 = vcombine.high %v219, %v219
    %v222 = vcombine.high %v200, %v200
    %v224 = vunpack.c.l.s4 1983009808
    %v225 = vunpack.c.0.s8 %v224
    %v226 = vlaneseq
    %v227 = vshrl.u32 %v226, 7
    %v228 = vsub.s32 %v225, %v227
    %v229 = vrot.slane %v200, %v228
    %v231 = vunpack.c.l.s4 1983009808
    %v232 = vunpack.c.0.s8 %v231
    %v233 = vlaneseq
    %v234 = vshrl.u32 %v233, 7
    %v235 = vsub.s32 %v232, %v234
    %v236 = vrot.slane %v222, %v235
    %v237 = vcombine.high %v229, %v229
    %v238 = vcombine.high %v236, %v236
    %vm247 = vcmask 254976
    %248 = vst.msk [vmem:[#allocation3] sm:$0x3] %vm247, %v212
    %249 = vst.msk [vmem:[#allocation3 + $0x2] sm:$0x3] %vm247, %v220
    %250 = vst.msk [vmem:[#allocation3 + $0x4] sm:$0x3] %vm247, %v219
    %251 = vst.msk [vmem:[#allocation3 + $0x6] sm:$0x3] %vm247, %v221
    %252 = vst.msk [vmem:[#allocation3 + $0x8] sm:$0x3] %vm247, %v229
    %253 = vst.msk [vmem:[#allocation3 + $0xa] sm:$0x3] %vm247, %v237
    %254 = vst.msk [vmem:[#allocation3 + $0xc] sm:$0x3] %vm247, %v236
    %255 = vst.msk [vmem:[#allocation3 + $0xe] sm:$0x3] %vm247, %v238
    %v256 = vld [vmem:[#allocation2] sm:$0x3]
    %v257 = vpack.c.bf16 %v256, %v256
    %v258 = vld [vmem:[#allocation9] sm:$0xf]
    %v259 = vld [vmem:[#allocation9 + $0x4] sm:$0xf]
    %v260 = vld [vmem:[#allocation9 + $0x8] sm:$0xf]
    %v261 = vld [vmem:[#allocation9 + $0xc] sm:$0xf]
    %v266 = vunpack.c.l.b16 %v258
    %v267 = vunpack.c.l.b16 %v259
    %v268 = vunpack.c.l.b16 %v260
    %v269 = vunpack.c.l.b16 %v261
    %v270 = vpack.c.b16 %v267, %v266
    %v271 = vpack.c.b16 %v269, %v268
    %v273 = vsel %vm152, %v257, 0
    %v276 = vsel %vm152, %v270, 0
    %v279 = vsel %vm152, %v271, 0
    %281 = vmatprep.subr.bf16.mxu0 0
    %282 = vmatpush1.bf16.xpose.msra.mxu0 0
    %283 = vmatprep.subr.bf16.mxu0 0
    %284 = vmatpush1.bf16.xpose.msra.mxu0 0
    %285 = vmatprep.subr.bf16.mxu0 0
    %286 = vmatpush1.bf16.xpose.msra.mxu0 0
    %287 = vmatprep.subr.bf16.mxu0 0
    %288 = vmatpush1.bf16.xpose.msra.mxu0 0
    %289 = vmatprep.subr.bf16.mxu0 0
    %290 = vmatpush1.bf16.xpose.msra.mxu0 0
    %291 = vmatprep.subr.bf16.mxu0 0
    %292 = vmatpush1.bf16.xpose.msra.mxu0 0
    %293 = vmatprep.subr.bf16.mxu0 0
    %294 = vmatpush1.bf16.xpose.msra.mxu0 %v279
    %295 = vmatprep.subr.bf16.mxu0 0
    %296 = vmatpush1.bf16.xpose.msra.mxu0 %v276
    %297 = vmatprep.subr.bf16.mxu0 0
    %298 = vmatpush2.bf16.xpose.msra.mxu0 0
    %299 = vmatprep.subr.bf16.mxu0 0
    %300 = vmatpush2.bf16.xpose.msra.mxu0 0
    %301 = vmatprep.subr.bf16.mxu0 0
    %302 = vmatpush2.bf16.xpose.msra.mxu0 0
    %303 = vmatprep.subr.bf16.mxu0 0
    %304 = vmatpush2.bf16.xpose.msra.mxu0 0
    %305 = vmatprep.subr.bf16.mxu0 0
    %306 = vmatpush2.bf16.xpose.msra.mxu0 0
    %307 = vmatprep.subr.bf16.mxu0 0
    %308 = vmatpush2.bf16.xpose.msra.mxu0 0
    %309 = vmatprep.subr.bf16.mxu0 0
    %310 = vmatpush2.bf16.xpose.msra.mxu0 0
    %311 = vmatprep.subr.bf16.mxu0 0
    %312 = vmatpush2.bf16.xpose.msra.mxu0 0
    %313 = vmatprep.mubr.bf16.mxu0 0
    %314 = vmatmul.mubr.bf16.gmra.mxu0 %v273
    %v315 = vpop.f32.mrf.mxu0
    %v316 = vadd.f32 0.0, %v315
    %v317 = vpop.f32.mrf.mxu0
    %v318 = vpop.f32.mrf.mxu0
    %v319 = vpop.f32.mrf.mxu0
    %320 = vdwg.mxu0
    %v321 = vld [vmem:[#allocation3] sm:$0x3]
    %v322 = vadd.f32 %v321, %v316
    %v323 = vtanh.pop %v322
    %v324 = vpack.c.bf16 %v323, %v323
    %vm325 = vcmask 253952
    %326 = vst.msk [vmem:[#allocation10] sm:$0x1] %vm325, %v324
    %v327 = vld [vmem:[#allocation9] sm:$0xf]
    %v328 = vld [vmem:[#allocation9 + $0x4] sm:$0xf]
    %v329 = vld [vmem:[#allocation9 + $0x8] sm:$0xf]
    %v330 = vld [vmem:[#allocation9 + $0xc] sm:$0xf]
    %v335 = vunpack.c.l.b16 %v327
    %v336 = vunpack.c.l.b16 %v328
    %v337 = vunpack.c.l.b16 %v329
    %v338 = vunpack.c.l.b16 %v330
    %v339 = vpack.c.b16 %v336, %v335
    %v340 = vpack.c.b16 %v338, %v337
    %v342 = vsel %vm152, %v324, 0
    %v345 = vsel %vm152, %v339, 0
    %v348 = vsel %vm152, %v340, 0
    %350 = vmatprep.subr.bf16.mxu0 0
    %351 = vmatpush1.bf16.xpose.msra.mxu0 0
    %352 = vmatprep.subr.bf16.mxu0 0
    %353 = vmatpush1.bf16.xpose.msra.mxu0 0
    %354 = vmatprep.subr.bf16.mxu0 0
    %355 = vmatpush1.bf16.xpose.msra.mxu0 0
    %356 = vmatprep.subr.bf16.mxu0 0
    %357 = vmatpush1.bf16.xpose.msra.mxu0 0
    %358 = vmatprep.subr.bf16.mxu0 0
    %359 = vmatpush1.bf16.xpose.msra.mxu0 0
    %360 = vmatprep.subr.bf16.mxu0 0
    %361 = vmatpush1.bf16.xpose.msra.mxu0 0
    %362 = vmatprep.subr.bf16.mxu0 0
    %363 = vmatpush1.bf16.xpose.msra.mxu0 %v348
    %364 = vmatprep.subr.bf16.mxu0 0
    %365 = vmatpush1.bf16.xpose.msra.mxu0 %v345
    %366 = vmatprep.subr.bf16.mxu0 0
    %367 = vmatpush2.bf16.xpose.msra.mxu0 0
    %368 = vmatprep.subr.bf16.mxu0 0
    %369 = vmatpush2.bf16.xpose.msra.mxu0 0
    %370 = vmatprep.subr.bf16.mxu0 0
    %371 = vmatpush2.bf16.xpose.msra.mxu0 0
    %372 = vmatprep.subr.bf16.mxu0 0
    %373 = vmatpush2.bf16.xpose.msra.mxu0 0
    %374 = vmatprep.subr.bf16.mxu0 0
    %375 = vmatpush2.bf16.xpose.msra.mxu0 0
    %376 = vmatprep.subr.bf16.mxu0 0
    %377 = vmatpush2.bf16.xpose.msra.mxu0 0
    %378 = vmatprep.subr.bf16.mxu0 0
    %379 = vmatpush2.bf16.xpose.msra.mxu0 0
    %380 = vmatprep.subr.bf16.mxu0 0
    %381 = vmatpush2.bf16.xpose.msra.mxu0 0
    %382 = vmatprep.mubr.bf16.mxu0 0
    %383 = vmatmul.mubr.bf16.gmra.mxu0 %v342
    %v384 = vpop.f32.mrf.mxu0
    %v385 = vadd.f32 0.0, %v384
    %v386 = vpop.f32.mrf.mxu0
    %v387 = vpop.f32.mrf.mxu0
    %v388 = vpop.f32.mrf.mxu0
    %389 = vdwg.mxu0
    %s390 = scalar_lea.vmem [#allocation3], 2
    %v391 = vld [vmem:[%s390] sm:$0x3]
    %v392 = vadd.f32 %v391, %v385
    %v393 = vtanh.pop %v392
    %v394 = vpack.c.bf16 %v393, %v393
    %s395 = scalar_lea.vmem [#allocation10], 1
    %396 = vst.msk [vmem:[%s395] sm:$0x1] %vm325, %v394
    %v397 = vld [vmem:[#allocation9] sm:$0xf]
    %v398 = vld [vmem:[#allocation9 + $0x4] sm:$0xf]
    %v399 = vld [vmem:[#allocation9 + $0x8] sm:$0xf]
    %v400 = vld [vmem:[#allocation9 + $0xc] sm:$0xf]
    %v405 = vunpack.c.l.b16 %v397
    %v406 = vunpack.c.l.b16 %v398
    %v407 = vunpack.c.l.b16 %v399
    %v408 = vunpack.c.l.b16 %v400
    %v409 = vpack.c.b16 %v406, %v405
    %v410 = vpack.c.b16 %v408, %v407
    %v412 = vsel %vm152, %v394, 0
    %v415 = vsel %vm152, %v409, 0
    %v418 = vsel %vm152, %v410, 0
    %420 = vmatprep.subr.bf16.mxu0 0
    %421 = vmatpush1.bf16.xpose.msra.mxu0 0
    %422 = vmatprep.subr.bf16.mxu0 0
    %423 = vmatpush1.bf16.xpose.msra.mxu0 0
    %424 = vmatprep.subr.bf16.mxu0 0
    %425 = vmatpush1.bf16.xpose.msra.mxu0 0
    %426 = vmatprep.subr.bf16.mxu0 0
    %427 = vmatpush1.bf16.xpose.msra.mxu0 0
    %428 = vmatprep.subr.bf16.mxu0 0
    %429 = vmatpush1.bf16.xpose.msra.mxu0 0
    %430 = vmatprep.subr.bf16.mxu0 0
    %431 = vmatpush1.bf16.xpose.msra.mxu0 0
    %432 = vmatprep.subr.bf16.mxu0 0
    %433 = vmatpush1.bf16.xpose.msra.mxu0 %v418
    %434 = vmatprep.subr.bf16.mxu0 0
    %435 = vmatpush1.bf16.xpose.msra.mxu0 %v415
    %436 = vmatprep.subr.bf16.mxu0 0
    %437 = vmatpush2.bf16.xpose.msra.mxu0 0
    %438 = vmatprep.subr.bf16.mxu0 0
    %439 = vmatpush2.bf16.xpose.msra.mxu0 0
    %440 = vmatprep.subr.bf16.mxu0 0
    %441 = vmatpush2.bf16.xpose.msra.mxu0 0
    %442 = vmatprep.subr.bf16.mxu0 0
    %443 = vmatpush2.bf16.xpose.msra.mxu0 0
    %444 = vmatprep.subr.bf16.mxu0 0
    %445 = vmatpush2.bf16.xpose.msra.mxu0 0
    %446 = vmatprep.subr.bf16.mxu0 0
    %447 = vmatpush2.bf16.xpose.msra.mxu0 0
    %448 = vmatprep.subr.bf16.mxu0 0
    %449 = vmatpush2.bf16.xpose.msra.mxu0 0
    %450 = vmatprep.subr.bf16.mxu0 0
    %451 = vmatpush2.bf16.xpose.msra.mxu0 0
    %452 = vmatprep.mubr.bf16.mxu0 0
    %453 = vmatmul.mubr.bf16.gmra.mxu0 %v412
    %v454 = vpop.f32.mrf.mxu0
    %v455 = vadd.f32 0.0, %v454
    %v456 = vpop.f32.mrf.mxu0
    %v457 = vpop.f32.mrf.mxu0
    %v458 = vpop.f32.mrf.mxu0
    %459 = vdwg.mxu0
    %s460 = scalar_lea.vmem [#allocation3], 4
    %v461 = vld [vmem:[%s460] sm:$0x3]
    %v462 = vadd.f32 %v461, %v455
    %v463 = vtanh.pop %v462
    %v464 = vpack.c.bf16 %v463, %v463
    %s465 = scalar_lea.vmem [#allocation10], 2
    %466 = vst.msk [vmem:[%s465] sm:$0x1] %vm325, %v464
    %v467 = vld [vmem:[#allocation9] sm:$0xf]
    %v468 = vld [vmem:[#allocation9 + $0x4] sm:$0xf]
    %v469 = vld [vmem:[#allocation9 + $0x8] sm:$0xf]
    %v470 = vld [vmem:[#allocation9 + $0xc] sm:$0xf]
    %v475 = vunpack.c.l.b16 %v467
    %v476 = vunpack.c.l.b16 %v468
    %v477 = vunpack.c.l.b16 %v469
    %v478 = vunpack.c.l.b16 %v470
    %v479 = vpack.c.b16 %v476, %v475
    %v480 = vpack.c.b16 %v478, %v477
    %v482 = vsel %vm152, %v464, 0
    %v485 = vsel %vm152, %v479, 0
    %v488 = vsel %vm152, %v480, 0
    %490 = vmatprep.subr.bf16.mxu0 0
    %491 = vmatpush1.bf16.xpose.msra.mxu0 0
    %492 = vmatprep.subr.bf16.mxu0 0
    %493 = vmatpush1.bf16.xpose.msra.mxu0 0
    %494 = vmatprep.subr.bf16.mxu0 0
    %495 = vmatpush1.bf16.xpose.msra.mxu0 0
    %496 = vmatprep.subr.bf16.mxu0 0
    %497 = vmatpush1.bf16.xpose.msra.mxu0 0
    %498 = vmatprep.subr.bf16.mxu0 0
    %499 = vmatpush1.bf16.xpose.msra.mxu0 0
    %500 = vmatprep.subr.bf16.mxu0 0
    %501 = vmatpush1.bf16.xpose.msra.mxu0 0
    %502 = vmatprep.subr.bf16.mxu0 0
    %503 = vmatpush1.bf16.xpose.msra.mxu0 %v488
    %504 = vmatprep.subr.bf16.mxu0 0
    %505 = vmatpush1.bf16.xpose.msra.mxu0 %v485
    %506 = vmatprep.subr.bf16.mxu0 0
    %507 = vmatpush2.bf16.xpose.msra.mxu0 0
    %508 = vmatprep.subr.bf16.mxu0 0
    %509 = vmatpush2.bf16.xpose.msra.mxu0 0
    %510 = vmatprep.subr.bf16.mxu0 0
    %511 = vmatpush2.bf16.xpose.msra.mxu0 0
    %512 = vmatprep.subr.bf16.mxu0 0
    %513 = vmatpush2.bf16.xpose.msra.mxu0 0
    %514 = vmatprep.subr.bf16.mxu0 0
    %515 = vmatpush2.bf16.xpose.msra.mxu0 0
    %516 = vmatprep.subr.bf16.mxu0 0
    %517 = vmatpush2.bf16.xpose.msra.mxu0 0
    %518 = vmatprep.subr.bf16.mxu0 0
    %519 = vmatpush2.bf16.xpose.msra.mxu0 0
    %520 = vmatprep.subr.bf16.mxu0 0
    %521 = vmatpush2.bf16.xpose.msra.mxu0 0
    %522 = vmatprep.mubr.bf16.mxu0 0
    %523 = vmatmul.mubr.bf16.gmra.mxu0 %v482
    %v524 = vpop.f32.mrf.mxu0
    %v525 = vadd.f32 0.0, %v524
    %v526 = vpop.f32.mrf.mxu0
    %v527 = vpop.f32.mrf.mxu0
    %v528 = vpop.f32.mrf.mxu0
    %529 = vdwg.mxu0
    %s530 = scalar_lea.vmem [#allocation3], 6
    %v531 = vld [vmem:[%s530] sm:$0x3]
    %v532 = vadd.f32 %v531, %v525
    %v533 = vtanh.pop %v532
    %v534 = vpack.c.bf16 %v533, %v533
    %s535 = scalar_lea.vmem [#allocation10], 3
    %536 = vst.msk [vmem:[%s535] sm:$0x1] %vm325, %v534
    %v537 = vld [vmem:[#allocation9] sm:$0xf]
    %v538 = vld [vmem:[#allocation9 + $0x4] sm:$0xf]
    %v539 = vld [vmem:[#allocation9 + $0x8] sm:$0xf]
    %v540 = vld [vmem:[#allocation9 + $0xc] sm:$0xf]
    %v545 = vunpack.c.l.b16 %v537
    %v546 = vunpack.c.l.b16 %v538
    %v547 = vunpack.c.l.b16 %v539
    %v548 = vunpack.c.l.b16 %v540
    %v549 = vpack.c.b16 %v546, %v545
    %v550 = vpack.c.b16 %v548, %v547
    %v552 = vsel %vm152, %v534, 0
    %v555 = vsel %vm152, %v549, 0
    %v558 = vsel %vm152, %v550, 0
    %560 = vmatprep.subr.bf16.mxu0 0
    %561 = vmatpush1.bf16.xpose.msra.mxu0 0
    %562 = vmatprep.subr.bf16.mxu0 0
    %563 = vmatpush1.bf16.xpose.msra.mxu0 0
    %564 = vmatprep.subr.bf16.mxu0 0
    %565 = vmatpush1.bf16.xpose.msra.mxu0 0
    %566 = vmatprep.subr.bf16.mxu0 0
    %567 = vmatpush1.bf16.xpose.msra.mxu0 0
    %568 = vmatprep.subr.bf16.mxu0 0
    %569 = vmatpush1.bf16.xpose.msra.mxu0 0
    %570 = vmatprep.subr.bf16.mxu0 0
    %571 = vmatpush1.bf16.xpose.msra.mxu0 0
    %572 = vmatprep.subr.bf16.mxu0 0
    %573 = vmatpush1.bf16.xpose.msra.mxu0 %v558
    %574 = vmatprep.subr.bf16.mxu0 0
    %575 = vmatpush1.bf16.xpose.msra.mxu0 %v555
    %576 = vmatprep.subr.bf16.mxu0 0
    %577 = vmatpush2.bf16.xpose.msra.mxu0 0
    %578 = vmatprep.subr.bf16.mxu0 0
    %579 = vmatpush2.bf16.xpose.msra.mxu0 0
    %580 = vmatprep.subr.bf16.mxu0 0
    %581 = vmatpush2.bf16.xpose.msra.mxu0 0
    %582 = vmatprep.subr.bf16.mxu0 0
    %583 = vmatpush2.bf16.xpose.msra.mxu0 0
    %584 = vmatprep.subr.bf16.mxu0 0
    %585 = vmatpush2.bf16.xpose.msra.mxu0 0
    %586 = vmatprep.subr.bf16.mxu0 0
    %587 = vmatpush2.bf16.xpose.msra.mxu0 0
    %588 = vmatprep.subr.bf16.mxu0 0
    %589 = vmatpush2.bf16.xpose.msra.mxu0 0
    %590 = vmatprep.subr.bf16.mxu0 0
    %591 = vmatpush2.bf16.xpose.msra.mxu0 0
    %592 = vmatprep.mubr.bf16.mxu0 0
    %593 = vmatmul.mubr.bf16.gmra.mxu0 %v552
    %v594 = vpop.f32.mrf.mxu0
    %v595 = vadd.f32 0.0, %v594
    %v596 = vpop.f32.mrf.mxu0
    %v597 = vpop.f32.mrf.mxu0
    %v598 = vpop.f32.mrf.mxu0
    %599 = vdwg.mxu0
    %s600 = scalar_lea.vmem [#allocation3], 8
    %v601 = vld [vmem:[%s600] sm:$0x3]
    %v602 = vadd.f32 %v601, %v595
    %v603 = vtanh.pop %v602
    %v604 = vpack.c.bf16 %v603, %v603
    %s605 = scalar_lea.vmem [#allocation10], 4
    %606 = vst.msk [vmem:[%s605] sm:$0x1] %vm325, %v604
    %v607 = vld [vmem:[#allocation9] sm:$0xf]
    %v608 = vld [vmem:[#allocation9 + $0x4] sm:$0xf]
    %v609 = vld [vmem:[#allocation9 + $0x8] sm:$0xf]
    %v610 = vld [vmem:[#allocation9 + $0xc] sm:$0xf]
    %v615 = vunpack.c.l.b16 %v607
    %v616 = vunpack.c.l.b16 %v608
    %v617 = vunpack.c.l.b16 %v609
    %v618 = vunpack.c.l.b16 %v610
    %v619 = vpack.c.b16 %v616, %v615
    %v620 = vpack.c.b16 %v618, %v617
    %v622 = vsel %vm152, %v604, 0
    %v625 = vsel %vm152, %v619, 0
    %v628 = vsel %vm152, %v620, 0
    %630 = vmatprep.subr.bf16.mxu0 0
    %631 = vmatpush1.bf16.xpose.msra.mxu0 0
    %632 = vmatprep.subr.bf16.mxu0 0
    %633 = vmatpush1.bf16.xpose.msra.mxu0 0
    %634 = vmatprep.subr.bf16.mxu0 0
    %635 = vmatpush1.bf16.xpose.msra.mxu0 0
    %636 = vmatprep.subr.bf16.mxu0 0
    %637 = vmatpush1.bf16.xpose.msra.mxu0 0
    %638 = vmatprep.subr.bf16.mxu0 0
    %639 = vmatpush1.bf16.xpose.msra.mxu0 0
    %640 = vmatprep.subr.bf16.mxu0 0
    %641 = vmatpush1.bf16.xpose.msra.mxu0 0
    %642 = vmatprep.subr.bf16.mxu0 0
    %643 = vmatpush1.bf16.xpose.msra.mxu0 %v628
    %644 = vmatprep.subr.bf16.mxu0 0
    %645 = vmatpush1.bf16.xpose.msra.mxu0 %v625
    %646 = vmatprep.subr.bf16.mxu0 0
    %647 = vmatpush2.bf16.xpose.msra.mxu0 0
    %648 = vmatprep.subr.bf16.mxu0 0
    %649 = vmatpush2.bf16.xpose.msra.mxu0 0
    %650 = vmatprep.subr.bf16.mxu0 0
    %651 = vmatpush2.bf16.xpose.msra.mxu0 0
    %652 = vmatprep.subr.bf16.mxu0 0
    %653 = vmatpush2.bf16.xpose.msra.mxu0 0
    %654 = vmatprep.subr.bf16.mxu0 0
    %655 = vmatpush2.bf16.xpose.msra.mxu0 0
    %656 = vmatprep.subr.bf16.mxu0 0
    %657 = vmatpush2.bf16.xpose.msra.mxu0 0
    %658 = vmatprep.subr.bf16.mxu0 0
    %659 = vmatpush2.bf16.xpose.msra.mxu0 0
    %660 = vmatprep.subr.bf16.mxu0 0
    %661 = vmatpush2.bf16.xpose.msra.mxu0 0
    %662 = vmatprep.mubr.bf16.mxu0 0
    %663 = vmatmul.mubr.bf16.gmra.mxu0 %v622
    %v664 = vpop.f32.mrf.mxu0
    %v665 = vadd.f32 0.0, %v664
    %v666 = vpop.f32.mrf.mxu0
    %v667 = vpop.f32.mrf.mxu0
    %v668 = vpop.f32.mrf.mxu0
    %669 = vdwg.mxu0
    %s670 = scalar_lea.vmem [#allocation3], 10
    %v671 = vld [vmem:[%s670] sm:$0x3]
    %v672 = vadd.f32 %v671, %v665
    %v673 = vtanh.pop %v672
    %v674 = vpack.c.bf16 %v673, %v673
    %s675 = scalar_lea.vmem [#allocation10], 5
    %676 = vst.msk [vmem:[%s675] sm:$0x1] %vm325, %v674
    %v677 = vld [vmem:[#allocation9] sm:$0xf]
    %v678 = vld [vmem:[#allocation9 + $0x4] sm:$0xf]
    %v679 = vld [vmem:[#allocation9 + $0x8] sm:$0xf]
    %v680 = vld [vmem:[#allocation9 + $0xc] sm:$0xf]
    %v685 = vunpack.c.l.b16 %v677
    %v686 = vunpack.c.l.b16 %v678
    %v687 = vunpack.c.l.b16 %v679
    %v688 = vunpack.c.l.b16 %v680
    %v689 = vpack.c.b16 %v686, %v685
    %v690 = vpack.c.b16 %v688, %v687
    %v692 = vsel %vm152, %v674, 0
    %v695 = vsel %vm152, %v689, 0
    %v698 = vsel %vm152, %v690, 0
    %700 = vmatprep.subr.bf16.mxu0 0
    %701 = vmatpush1.bf16.xpose.msra.mxu0 0
    %702 = vmatprep.subr.bf16.mxu0 0
    %703 = vmatpush1.bf16.xpose.msra.mxu0 0
    %704 = vmatprep.subr.bf16.mxu0 0
    %705 = vmatpush1.bf16.xpose.msra.mxu0 0
    %706 = vmatprep.subr.bf16.mxu0 0
    %707 = vmatpush1.bf16.xpose.msra.mxu0 0
    %708 = vmatprep.subr.bf16.mxu0 0
    %709 = vmatpush1.bf16.xpose.msra.mxu0 0
    %710 = vmatprep.subr.bf16.mxu0 0
    %711 = vmatpush1.bf16.xpose.msra.mxu0 0
    %712 = vmatprep.subr.bf16.mxu0 0
    %713 = vmatpush1.bf16.xpose.msra.mxu0 %v698
    %714 = vmatprep.subr.bf16.mxu0 0
    %715 = vmatpush1.bf16.xpose.msra.mxu0 %v695
    %716 = vmatprep.subr.bf16.mxu0 0
    %717 = vmatpush2.bf16.xpose.msra.mxu0 0
    %718 = vmatprep.subr.bf16.mxu0 0
    %719 = vmatpush2.bf16.xpose.msra.mxu0 0
    %720 = vmatprep.subr.bf16.mxu0 0
    %721 = vmatpush2.bf16.xpose.msra.mxu0 0
    %722 = vmatprep.subr.bf16.mxu0 0
    %723 = vmatpush2.bf16.xpose.msra.mxu0 0
    %724 = vmatprep.subr.bf16.mxu0 0
    %725 = vmatpush2.bf16.xpose.msra.mxu0 0
    %726 = vmatprep.subr.bf16.mxu0 0
    %727 = vmatpush2.bf16.xpose.msra.mxu0 0
    %728 = vmatprep.subr.bf16.mxu0 0
    %729 = vmatpush2.bf16.xpose.msra.mxu0 0
    %730 = vmatprep.subr.bf16.mxu0 0
    %731 = vmatpush2.bf16.xpose.msra.mxu0 0
    %732 = vmatprep.mubr.bf16.mxu0 0
    %733 = vmatmul.mubr.bf16.gmra.mxu0 %v692
    %v734 = vpop.f32.mrf.mxu0
    %v735 = vadd.f32 0.0, %v734
    %v736 = vpop.f32.mrf.mxu0
    %v737 = vpop.f32.mrf.mxu0
    %v738 = vpop.f32.mrf.mxu0
    %739 = vdwg.mxu0
    %s740 = scalar_lea.vmem [#allocation3], 12
    %v741 = vld [vmem:[%s740] sm:$0x3]
    %v742 = vadd.f32 %v741, %v735
    %v743 = vtanh.pop %v742
    %v744 = vpack.c.bf16 %v743, %v743
    %s745 = scalar_lea.vmem [#allocation10], 6
    %746 = vst.msk [vmem:[%s745] sm:$0x1] %vm325, %v744
    %v747 = vld [vmem:[#allocation9] sm:$0xf]
    %v748 = vld [vmem:[#allocation9 + $0x4] sm:$0xf]
    %v749 = vld [vmem:[#allocation9 + $0x8] sm:$0xf]
    %v750 = vld [vmem:[#allocation9 + $0xc] sm:$0xf]
    %v755 = vunpack.c.l.b16 %v747
    %v756 = vunpack.c.l.b16 %v748
    %v757 = vunpack.c.l.b16 %v749
    %v758 = vunpack.c.l.b16 %v750
    %v759 = vpack.c.b16 %v756, %v755
    %v760 = vpack.c.b16 %v758, %v757
    %v762 = vsel %vm152, %v744, 0
    %v765 = vsel %vm152, %v759, 0
    %v768 = vsel %vm152, %v760, 0
    %770 = vmatprep.subr.bf16.mxu0 0
    %771 = vmatpush1.bf16.xpose.msra.mxu0 0
    %772 = vmatprep.subr.bf16.mxu0 0
    %773 = vmatpush1.bf16.xpose.msra.mxu0 0
    %774 = vmatprep.subr.bf16.mxu0 0
    %775 = vmatpush1.bf16.xpose.msra.mxu0 0
    %776 = vmatprep.subr.bf16.mxu0 0
    %777 = vmatpush1.bf16.xpose.msra.mxu0 0
    %778 = vmatprep.subr.bf16.mxu0 0
    %779 = vmatpush1.bf16.xpose.msra.mxu0 0
    %780 = vmatprep.subr.bf16.mxu0 0
    %781 = vmatpush1.bf16.xpose.msra.mxu0 0
    %782 = vmatprep.subr.bf16.mxu0 0
    %783 = vmatpush1.bf16.xpose.msra.mxu0 %v768
    %784 = vmatprep.subr.bf16.mxu0 0
    %785 = vmatpush1.bf16.xpose.msra.mxu0 %v765
    %786 = vmatprep.subr.bf16.mxu0 0
    %787 = vmatpush2.bf16.xpose.msra.mxu0 0
    %788 = vmatprep.subr.bf16.mxu0 0
    %789 = vmatpush2.bf16.xpose.msra.mxu0 0
    %790 = vmatprep.subr.bf16.mxu0 0
    %791 = vmatpush2.bf16.xpose.msra.mxu0 0
    %792 = vmatprep.subr.bf16.mxu0 0
    %793 = vmatpush2.bf16.xpose.msra.mxu0 0
    %794 = vmatprep.subr.bf16.mxu0 0
    %795 = vmatpush2.bf16.xpose.msra.mxu0 0
    %796 = vmatprep.subr.bf16.mxu0 0
    %797 = vmatpush2.bf16.xpose.msra.mxu0 0
    %798 = vmatprep.subr.bf16.mxu0 0
    %799 = vmatpush2.bf16.xpose.msra.mxu0 0
    %800 = vmatprep.subr.bf16.mxu0 0
    %801 = vmatpush2.bf16.xpose.msra.mxu0 0
    %802 = vmatprep.mubr.bf16.mxu0 0
    %803 = vmatmul.mubr.bf16.gmra.mxu0 %v762
    %v804 = vpop.f32.mrf.mxu0
    %v805 = vadd.f32 0.0, %v804
    %v806 = vpop.f32.mrf.mxu0
    %v807 = vpop.f32.mrf.mxu0
    %v808 = vpop.f32.mrf.mxu0
    %809 = vdwg.mxu0
    %s810 = scalar_lea.vmem [#allocation3], 14
    %v811 = vld [vmem:[%s810] sm:$0x3]
    %v812 = vadd.f32 %v811, %v805
    %v813 = vtanh.pop %v812
    %v814 = vpack.c.bf16 %v813, %v813
    %s815 = scalar_lea.vmem [#allocation10], 7
    %816 = vst.msk [vmem:[%s815] sm:$0x1] %vm325, %v814
    %817 = vst.msk [vmem:[#allocation2] sm:$0x3] %vm247, %v813
    // Predicated region
    $region34: #{tpu_custom_call.1} parent=1 // pred_check
      _
    $region35: #{tpu_custom_call.1} parent=1 // pred_check_branch
      %819 = sbr.rel (0) target = $region37
    $region36: #{tpu_custom_call.1} parent=1 // pred_region
      %s821 = ssub.s32 128, 128
      %822 = vsyncadd [#allocation6], %s821
      %s823 = sshll.u32 [#allocation10], 4
      %s824 = int_to_ptr.vmem [resolvable:$true] %s823
      %829 = dma.vmem_to_hbm [thread:$0]  %s824, 128, %s4, [#allocation6], 16, 16, 1
    $region37: #{tpu_custom_call.1} parent=1 // pred_fallthru
      _
    // Predicated region
    $region38: #{tpu_custom_call.1} parent=1 // pred_check
      _
    $region39: #{tpu_custom_call.1} parent=1 // pred_check_branch
      %831 = sbr.rel (0) target = $region41
    $region40: #{tpu_custom_call.1} parent=1 // pred_region
      %832 = dma.done [#allocation6], 128
    $region41: #{tpu_custom_call.1} parent=1 // pred_fallthru
      _
    %833 = vsyncpa [#allocation5], 1
    %834 = vsyncpa [#allocation8], 1
    %835 = vsyncpa [#allocation6], 1

</llo_original>
